<compile_context>
chip_gen: v5e
topology: v5e:2x2
jax: 0.10.0
libtpu: 0.0.40
codegen_flags: <defaults>
</compile_context>

<pallas_src>
import numpy as np
import jax
import jax.numpy as jnp
from jax.experimental import pallas as pl
from jax.experimental.pallas import tpu as pltpu


# ----------------------------------------------------------------------------
# Fused kernel: Laplacian build + grounded contraction + current-vector build,
# one row strip of TM rows per grid step.
#
#   L[i,j] = rowsum(C[i])  if i == j  else  -C[i,j]     (== fixed_weights @ vec(C))
#   M      = L with row/col `last` zeroed and M[last,last] = 1  (grounded system)
#   b[i,0] = rowsum(C[i])  for i != last, 0 at i == last
#
#   cur_vec[last] in the reference never influences h_pred (the grounded
#   pseudo-inverse has a zero row/col at `last`); zeroing it makes
#   solve(M, b) == inv_L @ cur_vec exactly, with voltage[last] == 0.
# ----------------------------------------------------------------------------
def _lap_prep_kernel(last_ref, c_ref, m_ref, b_ref):
    tm, d = c_ref.shape
    i = pl.program_id(0)
    last = last_ref[0]
    c = c_ref[...]                                               # (TM, D) strip

    row_ids = jax.lax.broadcasted_iota(jnp.int32, (tm, d), 0) + i * tm  # global rows
    col_ids = jax.lax.broadcasted_iota(jnp.int32, (tm, d), 1)
    diag = row_ids == col_ids

    rs = jnp.sum(c, axis=1, keepdims=True)                       # (TM, 1) row sums (XLU)

    # Build M in place: off-diag -> -C, diag -> row sums, grounded row/col ->
    # identity pattern (zero except M[last, last] = 1).
    m = jnp.where(diag, rs, -c)
    grounded = (row_ids == last) | (col_ids == last)
    m_ref[...] = jnp.where(grounded, jnp.where(diag, 1.0, 0.0), m)

    # RHS column: reuse rs (no second full-matrix reduce), zero entry `last`.
    b_ref[...] = jnp.where(row_ids[:, :1] == last, 0.0, rs)


def _pick_row_strip(d):
    # Row-strip height: large enough to amortize the ~0.35 us per-step overhead,
    # small enough that double-buffered C + M strips (~= 4 * TM * D * 4 B) stay
    # inside the default scoped VMEM on every generation (v7x: 32 MiB default
    # of 64 MiB physical; e.g. D=4096 -> TM=256 is ~16 MiB of strip buffers).
    if d <= 256 or d % 256 != 0:
        return d            # single full-array strip (small or irregular D)
    return 256


def laplacian_prep(cond_mat, last_arr):
    d = cond_mat.shape[0]
    tm = _pick_row_strip(d)
    return pl.pallas_call(
        _lap_prep_kernel,
        out_shape=(jax.ShapeDtypeStruct((d, d), jnp.float32),
                   jax.ShapeDtypeStruct((d, 1), jnp.float32)),
        grid_spec=pltpu.PrefetchScalarGridSpec(
            num_scalar_prefetch=1,                 # `last` lands in SMEM
            grid=(d // tm,),
            in_specs=[pl.BlockSpec((tm, d), lambda i, last: (i, 0))],
            out_specs=(pl.BlockSpec((tm, d), lambda i, last: (i, 0)),
                       pl.BlockSpec((tm, 1), lambda i, last: (i, 0)))),
        compiler_params=pltpu.CompilerParams(
            # Independent row strips: shard across both TensorCores on v7x.
            dimension_semantics=("parallel",)),
    )(last_arr, cond_mat)


# ----------------------------------------------------------------------------
# Module wrapper (whole forward jit-compiled into one executable).
# ----------------------------------------------------------------------------
class InvLearnDirectLaplacianPallas:
    def __init__(self, dimension, key):
        self.dimension = dimension
        # Learnable conductance matrix; deterministic uniform init (like torch.rand).
        # The fixed (D^2, D^2) Laplacian-builder weight matrix is never
        # materialized: its matmul is computed analytically inside the kernel.
        self.conductance_matrix = jax.random.uniform(
            key, (dimension, dimension), dtype=jnp.float32)
        self._forward = jax.jit(self._forward_impl)

    def _forward_impl(self, cond, first, last):
        # Fused Pallas kernel: grounded Laplacian system M and RHS column b.
        M, b = laplacian_prep(cond, jnp.reshape(last, (1,)))     # (D, D), (D, 1)

        # Grounded reduced-system solve (replaces explicit inverse + matvec).
        # Stays in XLA: dense LU has no clean Pallas equivalent.
        voltage = jnp.linalg.solve(M, b)                         # (D, 1), voltage[last] == 0

        # ones_vec has exactly two nonzeros (+1 at first, -1 at last; the last
        # write overwrites first when equal), so the final dot collapses to a
        # 2-element gather + subtract — no kernel launch, no DMA.
        h = voltage[first, 0] - voltage[last, 0]
        return jnp.reshape(h, (1, 1))

    def __call__(self, first_cam_trap, last_cam_trap):
        first = jnp.asarray(first_cam_trap, dtype=jnp.int32)
        last = jnp.asarray(last_cam_trap, dtype=jnp.int32)
        return self._forward(self.conductance_matrix, first, last)


# ----------------------------------------------------------------------------
# Faithful float64 NumPy reference (explicit fixed-weights matmul and explicit
# grounded pseudo-inverse) for validating the fast Pallas path.
# ----------------------------------------------------------------------------
def reference_forward(cond_matrix, first, last):
    C = np.asarray(cond_matrix, dtype=np.float64)
    d = C.shape[0]
    n = d * d
    W = -1.0 * np.eye(n, dtype=np.float64)
    j = 0
    for i in range(0, n, d + 1):
        W[i, j:j + d] = 1.0
        j += d
    L = (W @ C.reshape(-1, 1)).reshape(d, d)

    ones_vec = np.zeros((1, d), dtype=np.float64)
    ones_vec[0, first] = 1.0
    ones_vec[0, last] = -1.0

    rs = C.sum(axis=1).reshape(-1, 1)
    rs[last] = 0.0
    rs[last] = -1.0 * rs.sum()

    ids = np.arange(d)
    mask = (ids[:, None] == last) | (ids[None, :] == last)
    M = np.where(mask, 0.0, L)
    M = M + np.where((ids[:, None] == last) & (ids[None, :] == last), 1.0, 0.0)
    inv_L = np.linalg.inv(M)
    inv_L = np.where(mask, 0.0, inv_L)            # grounded node -> zero row/col
    return ones_vec @ (inv_L @ rs)                # (1, 1)


if __name__ == "__main__":
    D = 16                              # small graph size ("dimension")
    first_cam_trap, last_cam_trap = 3, 12

    key = jax.random.PRNGKey(0)
    model = InvLearnDirectLaplacianPallas(D, key)

    h_pred = model(first_cam_trap, last_cam_trap)
    jax.block_until_ready(h_pred)

    h_ref = reference_forward(model.conductance_matrix, first_cam_trap, last_cam_trap)

    assert h_pred.shape == (1, 1)
    np.testing.assert_allclose(np.asarray(h_pred, dtype=np.float64), h_ref,
                               rtol=2e-3, atol=1e-4)
    print("KERNEL_OK")
</pallas_src>

<mosaic_0001>
module attributes {stable_mosaic.version = 11 : i64} {
  func.func @_lap_prep_kernel(%arg0: i32, %arg1: memref<1xi32, #tpu.memory_space<smem>>, %arg2: memref<16x16xf32, #tpu.memory_space<vmem>>, %arg3: memref<16x16xf32, #tpu.memory_space<vmem>>, %arg4: memref<16x1xf32, #tpu.memory_space<vmem>>) attributes {dimension_semantics = [#tpu.dimension_semantics<parallel>], iteration_bounds = array<i64: 1>, scalar_prefetch = 1 : i64, scratch_operands = 0 : i64, tpu.core_type = #tpu.core_type<tc>, window_params = [{transform_indices = @transform_0, window_bounds = array<i64: 16, 16>}, {transform_indices = @transform_1, window_bounds = array<i64: 16, 16>}, {transform_indices = @transform_2, window_bounds = array<i64: 16, 1>}]} {
    %c0 = arith.constant 0 : index
    %0 = memref.load %arg1[%c0] : memref<1xi32, #tpu.memory_space<smem>>
    %c0_0 = arith.constant 0 : index
    %c0_1 = arith.constant 0 : index
    %1 = vector.load %arg2[%c0_0, %c0_1] : memref<16x16xf32, #tpu.memory_space<vmem>>, vector<16x16xf32>
    %2 = tpu.iota {dimensions = array<i32: 0>} : vector<16x16xi32>
    %c16_i32 = arith.constant 16 : i32
    %3 = arith.muli %arg0, %c16_i32 : i32
    %4 = vector.broadcast %3 : i32 to vector<16x16xi32>
    %5 = arith.addi %2, %4 : vector<16x16xi32>
    %6 = tpu.iota {dimensions = array<i32: 1>} : vector<16x16xi32>
    %7 = arith.cmpi eq, %5, %6 : vector<16x16xi32>
    %cst = arith.constant dense<0.000000e+00> : vector<16xf32>
    %8 = vector.multi_reduction <add>, %1, %cst [1] : vector<16x16xf32> to vector<16xf32>
    %9 = vector.shape_cast %8 : vector<16xf32> to vector<16x1xf32>
    %cst_2 = arith.constant 0.000000e+00 : f32
    %10 = vector.broadcast %cst_2 : f32 to vector<16x16xf32>
    %11 = arith.subf %10, %1 : vector<16x16xf32>
    %12 = vector.shape_cast %9 : vector<16x1xf32> to vector<16x1xf32>
    %13 = vector.broadcast %12 : vector<16x1xf32> to vector<16x16xf32>
    %14 = arith.select %7, %13, %11 : vector<16x16xi1>, vector<16x16xf32>
    %15 = vector.broadcast %0 : i32 to vector<16x16xi32>
    %16 = arith.cmpi eq, %5, %15 : vector<16x16xi32>
    %17 = vector.broadcast %0 : i32 to vector<16x16xi32>
    %18 = arith.cmpi eq, %6, %17 : vector<16x16xi32>
    %19 = arith.ori %16, %18 : vector<16x16xi1>
    %cst_3 = arith.constant 1.000000e+00 : f32
    %cst_4 = arith.constant 0.000000e+00 : f32
    %20 = vector.broadcast %cst_3 : f32 to vector<16x16xf32>
    %21 = vector.broadcast %cst_4 : f32 to vector<16x16xf32>
    %22 = arith.select %7, %20, %21 : vector<16x16xi1>, vector<16x16xf32>
    %23 = arith.select %19, %22, %14 : vector<16x16xi1>, vector<16x16xf32>
    %c0_5 = arith.constant 0 : index
    %c0_6 = arith.constant 0 : index
    %24 = vector.load %arg3[%c0_5, %c0_6] : memref<16x16xf32, #tpu.memory_space<vmem>>, vector<16x16xf32>
    tpu.vector_store %arg3[%c0_5, %c0_6], %23 {strides = array<i32>} : memref<16x16xf32, #tpu.memory_space<vmem>>, vector<16x16xf32>,
    %25 = vector.extract_strided_slice %5 {offsets = [0, 0], sizes = [16, 1], strides = [1, 1]} : vector<16x16xi32> to vector<16x1xi32>
    %26 = vector.broadcast %0 : i32 to vector<16x1xi32>
    %27 = arith.cmpi eq, %25, %26 : vector<16x1xi32>
    %cst_7 = arith.constant 0.000000e+00 : f32
    %28 = vector.broadcast %cst_7 : f32 to vector<16x1xf32>
    %29 = arith.select %27, %28, %9 : vector<16x1xi1>, vector<16x1xf32>
    %c0_8 = arith.constant 0 : index
    %c0_9 = arith.constant 0 : index
    %30 = vector.load %arg4[%c0_8, %c0_9] : memref<16x1xf32, #tpu.memory_space<vmem>>, vector<16x1xf32>
    tpu.vector_store %arg4[%c0_8, %c0_9], %29 {strides = array<i32>} : memref<16x1xf32, #tpu.memory_space<vmem>>, vector<16x1xf32>,
    return
  }
  func.func @transform_0(%arg0: i32, %arg1: memref<1xi32, #tpu.memory_space<smem>>) -> (i32, i32) {
    %c0_i32 = arith.constant 0 : i32
    %c0_i32_0 = arith.constant 0 : i32
    return %arg0, %c0_i32 : i32, i32
  }
  func.func @transform_1(%arg0: i32, %arg1: memref<1xi32, #tpu.memory_space<smem>>) -> (i32, i32) {
    %c0_i32 = arith.constant 0 : i32
    %c0_i32_0 = arith.constant 0 : i32
    return %arg0, %c0_i32 : i32, i32
  }
  func.func @transform_2(%arg0: i32, %arg1: memref<1xi32, #tpu.memory_space<smem>>) -> (i32, i32) {
    %c0_i32 = arith.constant 0 : i32
    %c0_i32_0 = arith.constant 0 : i32
    return %arg0, %c0_i32 : i32, i32
  }
}

</mosaic_0001>

<llo_original>
// kernel: custom-call.8
$region0: #{custom-call.8}
  %s0 = inlined_call_operand.vmem [shape: f32[16,16], index: 0, kind: input, shape index: {}]
  %s1 = inlined_call_operand.vmem [shape: f32[16,16], index: 1, kind: output, shape index: {0}]
  %s2 = inlined_call_operand.hbm [shape: s32[16], index: 2, kind: output, shape index: {1}]
  %s3 = inlined_call_operand.vmem [shape: s32[16], index: 3, kind: output, shape index: {2}]
  %4 = xla_tuple %s1, %s2, %s3
  $region1: #{custom-call.8} parent=0
    #allocation0 [shape = 'u8[8192]{0}', space=vmem, size = 0x2000, scoped, tag = 'operand span for operand 0']
    #allocation1 [shape = 'u8[8192]{0}', space=vmem, size = 0x2000, scoped, tag = 'operand span for operand 1']
    #allocation2 [shape = 'u8[4096]{0}', space=vmem, size = 0x1000, scoped, tag = 'operand span for operand 2']
    #allocation3 [shape = 'u8[512]{0}', space=vmem, size = 0x400, scoped, tag = 'packed  for operand 2']
    #allocation4 [shape = 's32[1]{0}', space=sflag, size = 0x4, scoped, tag = 'scoped memory for custom-call.8']
    #allocation5 [shape = 'u8[4096]{0}', space=vmem, size = 0x1000, scoped, tag = 'operand span for operand 3']
    #allocation6 [shape = 'u8[512]{0}', space=vmem, size = 0x400, scoped, tag = 'packed  for operand 3']
    #allocation7 [shape = 's32[16,128]{1,0}', space=vmem, size = 0x2000, scoped, tag = 'scratch for permutations']
    %5 = vsyncpa [#allocation4], 0
    // Predicated region
    $region2: #{custom-call.8} parent=1 // pred_check
      _
    $region3: #{custom-call.8} parent=1 // pred_check_branch
      %7 = sbr.rel (0) target = $region5
    $region4: #{custom-call.8} parent=1 // pred_region
      %p9 = scmp.gt.s32.totalorder 2, 0
      // Predicated region
      $region6: #{custom-call.8} parent=4 // pred_check
        %p10 = pneg %p9
      $region7: #{custom-call.8} parent=4 // pred_check_branch
        %12 = sbr.rel (%p10) target = $region9
      $region8: #{custom-call.8} parent=4 // pred_region
        %s13 = ssub.s32 2, 1
        %s14 = smul.u32 %s13, 8
        %s15 = scalar_lea.vmem %s0, %s14
        %v16 = vld [vmem:[%s0] sm:$0xff]
        // While loop
        $region10: #{custom-call.8} parent=8 // loop_pre_header
          _
        $region11: #{custom-call.8} parent=8 // loop_header
          %s17 = sphi %s0, %s39
          %s18 = sphi [#allocation0], %s40
          %v19 = vphi %v16, %v41
          %s20 = ssub.s32 %s15, 64
          %p21 = scmp.gt.s32.totalorder %s17, %s20
        $region12: #{custom-call.8} parent=8 // loop_header_branch
          %23 = sbr.rel (%p21) target = $region16
        $region13: #{custom-call.8} parent=8 // loop_body
          %24 = vst [vmem:[%s18] sm:$0xff] %v19
          %v25 = vld [vmem:[%s17 + $0x8] sm:$0xff]
          %26 = vst [vmem:[%s18 + $0x8] sm:$0xff] %v25
          %v27 = vld [vmem:[%s17 + $0x10] sm:$0xff]
          %28 = vst [vmem:[%s18 + $0x10] sm:$0xff] %v27
          %v29 = vld [vmem:[%s17 + $0x18] sm:$0xff]
          %30 = vst [vmem:[%s18 + $0x18] sm:$0xff] %v29
          %v31 = vld [vmem:[%s17 + $0x20] sm:$0xff]
          %32 = vst [vmem:[%s18 + $0x20] sm:$0xff] %v31
          %v33 = vld [vmem:[%s17 + $0x28] sm:$0xff]
          %34 = vst [vmem:[%s18 + $0x28] sm:$0xff] %v33
          %v35 = vld [vmem:[%s17 + $0x30] sm:$0xff]
          %36 = vst [vmem:[%s18 + $0x30] sm:$0xff] %v35
          %v37 = vld [vmem:[%s17 + $0x38] sm:$0xff]
          %38 = vst [vmem:[%s18 + $0x38] sm:$0xff] %v37
        $region14: #{custom-call.8} parent=8 // loop_footer
          %s39 = scalar_lea.vmem %s17, 64
          %s40 = scalar_lea.vmem %s18, 64
          %v41 = vld [vmem:[%s17 + $0x40] sm:$0xff]
        $region15: #{custom-call.8} parent=8 // loop_footer_branch
          %42 = sbr.rel target = $region11
        $region16: #{custom-call.8} parent=8 // loop_exit
          _
        // While loop
        $region17: #{custom-call.8} parent=8 // loop_pre_header
          _
        $region18: #{custom-call.8} parent=8 // loop_header
          %s43 = sphi %s17, %s51
          %s44 = sphi %s18, %s52
          %v45 = vphi %v19, %v45
          %p46 = scmp.gt.s32.totalorder %s43, %s15
        $region19: #{custom-call.8} parent=8 // loop_header_branch
          %48 = sbr.rel (%p46) target = $region23
        $region20: #{custom-call.8} parent=8 // loop_body
          %v49 = vld [vmem:[%s43] sm:$0xff]
          %50 = vst [vmem:[%s44] sm:$0xff] %v49
        $region21: #{custom-call.8} parent=8 // loop_footer
          %s51 = scalar_lea.vmem %s43, 8
          %s52 = scalar_lea.vmem %s44, 8
        $region22: #{custom-call.8} parent=8 // loop_footer_branch
          %53 = sbr.rel target = $region18
        $region23: #{custom-call.8} parent=8 // loop_exit
          _
      $region9: #{custom-call.8} parent=4 // pred_fallthru
        _
      %s55 = ssub.s32 1, 1
      %s56 = smul.u32 2, 8
      %s57 = scalar_lea.vmem [#allocation0], %s56
      %s58 = smul.u32 2, 8
      %s59 = scalar_lea.vmem %s0, %s58
      %v60 = vld [vmem:[%s59] sm:%s55]
      %61 = vst [vmem:[%s57] sm:%s55] %v60
    $region5: #{custom-call.8} parent=1 // pred_fallthru
      _
    %v62 = vld [vmem:[#allocation0] sm:$0xff]
    %63 = vst [vmem:[#allocation1] sm:$0xff] %v62
    %s64 = scalar_lea.vmem [#allocation1], 8
    %s65 = scalar_lea.vmem [#allocation0], 8
    %v66 = vld [vmem:[%s65] sm:$0xff]
    %67 = vst [vmem:[%s64] sm:$0xff] %v66
    %68 = vst [vmem:[#allocation2] sm:$0x1] 0
    %v69 = vlaneseq
    %v70 = vshrl.u32 %v69, 7
    %v71 = vmov %v70
    loop: start=0, step=1, limit=2
    $region24: #{custom-call.8} parent=1 // loop_pre_header
      _
    $region25: #{custom-call.8} parent=1 // loop_header
      %s73 = sphi 0, %s77
      %p74 = scmp.ge.s32.totalorder %s73, 2
    $region26: #{custom-call.8} parent=1 // loop_header_branch
      %76 = sbr.rel (%p74) target = $region30
    $region27: #{custom-call.8} parent=1 // loop_body
      %s78 = smul.addr %s73, 8
      %s79 = scalar_lea.vmem [#allocation7], %s78
      %s80 = smul.u32 %s73, 8
      %v81 = vstv %s80
      %v82 = vadd.s32 %v71, %v81
      %83 = vst [vmem:[%s79] sm:$0xff] %v82
    $region28: #{custom-call.8} parent=1 // loop_footer
      %s77 = sadd.s32 1, %s73
    $region29: #{custom-call.8} parent=1 // loop_footer_branch
      %72 = sbr.rel target = $region25
    $region30: #{custom-call.8} parent=1 // loop_exit
      _
    loop: start=0, step=1, limit=16
    $region31: #{custom-call.8} parent=1 // loop_pre_header
      _
    $region32: #{custom-call.8} parent=1 // loop_header
      %s85 = sphi 0, %s89
      %p86 = scmp.ge.s32.totalorder %s85, 16
    $region33: #{custom-call.8} parent=1 // loop_header_branch
      %88 = sbr.rel (%p86) target = $region37
    $region34: #{custom-call.8} parent=1 // loop_body
      %v90 = vstv %s85
      %v91 = vlaneseq
      %v92 = vshrl.u32 %v91, 7
      %v93 = vmov %v92
      %v94 = vld [vmem:[#allocation1] sm:$0xff]
      %v95 = vand.u32 2147483647, %v94
      %v97 = vstv %s85
      %vm98 = vcmp.ge.s32.totalorder %v93, %v97
      %vm99 = vcmp.lt.s32.totalorder %v93, 16
      %vm100 = vmand %vm98, %vm99
      %vm101 = vcmp.lt.f32.partialorder -inf, %v95
      %vm102 = vmand %vm100, %vm101
      %v103 = vsel %vm102, %v93, %v90
      %v104 = vsel %vm102, %v95, -inf
      %s105 = scalar_lea.vmem [#allocation1], 8
      %v106 = vld [vmem:[%s105] sm:$0xff]
      %v107 = vand.u32 2147483647, %v106
      %v108 = vadd.s32 %v93, 8
      %v109 = vstv %s85
      %vm110 = vcmp.ge.s32.totalorder %v108, %v109
      %vm111 = vcmp.lt.s32.totalorder %v108, 16
      %vm112 = vmand %vm110, %vm111
      %vm113 = vcmp.lt.f32.partialorder %v104, %v107
      %vm114 = vmand %vm112, %vm113
      %v115 = vsel %vm114, %v108, %v103
      %v116 = vsel %vm114, %v107, %v104
      %v117 = vrot.slane %v116, 1
      %v118 = vrot.slane %v115, 1
      %vm119 = vcmp.ge.f32.partialorder %v117, %v116
      %v120 = vsel %vm119, %v117, %v116
      %v121 = vsel %vm119, %v118, %v115
      %v122 = vrot.slane %v117, 1
      %v123 = vrot.slane %v118, 1
      %vm124 = vcmp.ge.f32.partialorder %v122, %v120
      %v125 = vsel %vm124, %v122, %v120
      %v126 = vsel %vm124, %v123, %v121
      %v127 = vrot.slane %v122, 1
      %v128 = vrot.slane %v123, 1
      %vm129 = vcmp.ge.f32.partialorder %v127, %v125
      %v130 = vsel %vm129, %v127, %v125
      %v131 = vsel %vm129, %v128, %v126
      %v132 = vrot.slane %v127, 1
      %v133 = vrot.slane %v128, 1
      %vm134 = vcmp.ge.f32.partialorder %v132, %v130
      %v135 = vsel %vm134, %v132, %v130
      %v136 = vsel %vm134, %v133, %v131
      %v137 = vrot.slane %v132, 1
      %v138 = vrot.slane %v133, 1
      %vm139 = vcmp.ge.f32.partialorder %v137, %v135
      %v140 = vsel %vm139, %v137, %v135
      %v141 = vsel %vm139, %v138, %v136
      %v142 = vrot.slane %v137, 1
      %v143 = vrot.slane %v138, 1
      %vm144 = vcmp.ge.f32.partialorder %v142, %v140
      %v145 = vsel %vm144, %v142, %v140
      %v146 = vsel %vm144, %v143, %v141
      %v147 = vrot.slane %v142, 1
      %v148 = vrot.slane %v143, 1
      %vm149 = vcmp.ge.f32.partialorder %v147, %v145
      %v150 = vsel %vm149, %v147, %v145
      %v151 = vsel %vm149, %v148, %v146
      %s152 = ssub.s32 128, %s85
      %153 = vrot.lane.b32.xlu0 %v151, %s152
      %v154 = vpop.permute.xlu0 %153
      %s155 = vtos %v154
      %v156 = vstv %s85
      %v157 = vlaneseq
      %v158 = vand.u32 %v157, 127
      %vm159 = vcmp.eq.s32.totalorder %v158, %v156
      %v160 = vstv %s155
      %v161 = vld [vmem:[#allocation2] ss:$0 sm:$0xff]
      %v162 = vsel %vm159, %v160, %v161
      %163 = vst [vmem:[#allocation2] sm:$0x1] %v162
      %s164 = scalar_lea.vmem [#allocation1], %s85
      %s165 = scalar_lea.vmem [#allocation1], %s155
      %v166 = vld [vmem:[%s164] ss:$0 sm:$0xff]
      %v167 = vld [vmem:[%s165] ss:$0 sm:$0xff]
      %168 = vst [vmem:[%s165] sm:$0x1] %v166
      %169 = vst [vmem:[%s164] sm:$0x1] %v167
      %s170 = scalar_lea.vmem [#allocation7], %s85
      %s171 = scalar_lea.vmem [#allocation7], %s155
      %v172 = vld [vmem:[%s170] ss:$0 sm:$0xff]
      %v173 = vld [vmem:[%s171] ss:$0 sm:$0xff]
      %174 = vst [vmem:[%s171] sm:$0x1] %v172
      %175 = vst [vmem:[%s170] sm:$0x1] %v173
      %vm176 = vcmp.ne.f32.partialorder %v167, 0.0
      %vm177 = vmand %vm159, %vm176
      %v178 = vsel %vm177, %v167, 1.0
      %v179 = vlaneseq
      %v180 = vand.u32 %v179, 127
      %v181 = vstv %s85
      %vm182 = vcmp.gt.s32.totalorder %v180, %v181
      %v183 = vsel %vm182, %v167, 0.0
      %v184 = vlaneseq
      %v185 = vshrl.u32 %v184, 7
      %v186 = vmov %v185
      %v187 = vld [vmem:[#allocation1] sm:$0xff]
      %v189 = vstv %s85
      %vm190 = vcmp.gt.s32.totalorder %v186, %v189
      %v191 = vsel %vm190, %v178, 1.0
      %v192 = vrcp.pop %v191
      %v193 = vmul.f32 %v191, %v192
      %v194 = vsub.f32 1.0, %v193
      %v195 = vmul.f32 %v192, %v194
      %v196 = vadd.f32 %v192, %v195
      %vm197 = vweird.f32 %v191
      %vm198 = vweird.f32 %v192
      %vm199 = vmor %vm197, %vm198
      %v200 = vsel %vm199, %v192, %v196
      %v201 = vand.u32 2147483647, %v191
      %vm202 = vcmp.eq.f32.partialorder %v201, 8.507059e+37
      %v203 = vand.u32 %v191, 2147483648
      %v204 = vor.u32 1.1754944e-38, %v203
      %v205 = vsel %vm202, %v204, %v200
      %v206 = vmul.f32 %v187, %v205
      %vm207 = vmand %vm190, %vm159
      %v208 = vsel %vm207, %v206, 0.0
      %209 = vadd.xlane.f32.xlu0 %v208
      %v210 = vpop.xlane.xlu0 %209
      %v211 = vmul.f32 %v210, %v183
      %v212 = vsub.f32 %v206, %v211
      %213 = vst [vmem:[#allocation1] sm:$0xff] %v212
      %s214 = scalar_lea.vmem [#allocation1], 8
      %v215 = vld [vmem:[%s214] sm:$0xff]
      %v216 = vadd.s32 %v186, 8
      %v217 = vstv %s85
      %vm218 = vcmp.gt.s32.totalorder %v216, %v217
      %v219 = vsel %vm218, %v178, 1.0
      %v220 = vrcp.pop %v219
      %v221 = vmul.f32 %v219, %v220
      %v222 = vsub.f32 1.0, %v221
      %v223 = vmul.f32 %v220, %v222
      %v224 = vadd.f32 %v220, %v223
      %vm225 = vweird.f32 %v219
      %vm226 = vweird.f32 %v220
      %vm227 = vmor %vm225, %vm226
      %v228 = vsel %vm227, %v220, %v224
      %v229 = vand.u32 2147483647, %v219
      %vm230 = vcmp.eq.f32.partialorder %v229, 8.507059e+37
      %v231 = vand.u32 %v219, 2147483648
      %v232 = vor.u32 1.1754944e-38, %v231
      %v233 = vsel %vm230, %v232, %v228
      %v234 = vmul.f32 %v215, %v233
      %vm235 = vmand %vm218, %vm159
      %v236 = vsel %vm235, %v234, 0.0
      %237 = vadd.xlane.f32.xlu0 %v236
      %v238 = vpop.xlane.xlu0 %237
      %v239 = vmul.f32 %v238, %v183
      %v240 = vsub.f32 %v234, %v239
      %241 = vst [vmem:[%s214] sm:$0xff] %v240
    $region35: #{custom-call.8} parent=1 // loop_footer
      %s89 = sadd.s32 1, %s85
    $region36: #{custom-call.8} parent=1 // loop_footer_branch
      %84 = sbr.rel target = $region32
    $region37: #{custom-call.8} parent=1 // loop_exit
      _
    %v242 = vld [vmem:[#allocation7] sm:$0xff]
    %s243 = scalar_lea.vmem [#allocation7], 8
    %v244 = vld [vmem:[%s243] sm:$0xff]
    %s245 = scalar_lea.vmem [#allocation7], 16
    %s246 = scalar_lea.vmem [#allocation7], 24
    %s247 = scalar_lea.vmem [#allocation7], 32
    %s248 = scalar_lea.vmem [#allocation7], 40
    %s249 = scalar_lea.vmem [#allocation7], 48
    %s250 = scalar_lea.vmem [#allocation7], 56
    %s251 = scalar_lea.vmem [#allocation7], 64
    %s252 = scalar_lea.vmem [#allocation7], 72
    %s253 = scalar_lea.vmem [#allocation7], 80
    %s254 = scalar_lea.vmem [#allocation7], 88
    %s255 = scalar_lea.vmem [#allocation7], 96
    %s256 = scalar_lea.vmem [#allocation7], 104
    %s257 = scalar_lea.vmem [#allocation7], 112
    %s258 = scalar_lea.vmem [#allocation7], 120
    %259 = vxpose.xlu0.b32.start [1/16] %v242, 128
    %260 = vxpose.xlu0.b32.cont [2/16] %v244, 128
    %261 = vxpose.xlu0.b32.cont [3/16] 0, 128
    %262 = vxpose.xlu0.b32.cont [4/16] 0, 128
    %263 = vxpose.xlu0.b32.cont [5/16] 0, 128
    %264 = vxpose.xlu0.b32.cont [6/16] 0, 128
    %265 = vxpose.xlu0.b32.cont [7/16] 0, 128
    %266 = vxpose.xlu0.b32.cont [8/16] 0, 128
    %267 = vxpose.xlu0.b32.cont [9/16] 0, 128
    %268 = vxpose.xlu0.b32.cont [10/16] 0, 128
    %269 = vxpose.xlu0.b32.cont [11/16] 0, 128
    %270 = vxpose.xlu0.b32.cont [12/16] 0, 128
    %271 = vxpose.xlu0.b32.cont [13/16] 0, 128
    %272 = vxpose.xlu0.b32.cont [14/16] 0, 128
    %273 = vxpose.xlu0.b32.cont [15/16] 0, 128
    %274 = vxpose.xlu0.b32.end [16/16] 0, 128
    %v275 = vpop.trf.xlu0
    %v276 = vpop.trf.xlu0
    %v277 = vpop.trf.xlu0
    %v278 = vpop.trf.xlu0
    %v279 = vpop.trf.xlu0
    %v280 = vpop.trf.xlu0
    %v281 = vpop.trf.xlu0
    %v282 = vpop.trf.xlu0
    %v283 = vpop.trf.xlu0
    %v284 = vpop.trf.xlu0
    %v285 = vpop.trf.xlu0
    %v286 = vpop.trf.xlu0
    %v287 = vpop.trf.xlu0
    %v288 = vpop.trf.xlu0
    %v289 = vpop.trf.xlu0
    %v290 = vpop.trf.xlu0
    %291 = vst [vmem:[#allocation5] sm:$0x1] %v275
    %s293 = ssub.s32 2, 1
    %v294 = vld [vmem:[#allocation2] sm:%s293]
    %s296 = ssub.s32 2, 1
    %297 = vst [vmem:[#allocation3] sm:%s296] %v294
    %s299 = ssub.s32 2, 1
    %v300 = vld [vmem:[#allocation5] sm:%s299]
    %s302 = ssub.s32 2, 1
    %303 = vst [vmem:[#allocation6] sm:%s302] %v300
    // Predicated region
    $region38: #{custom-call.8} parent=1 // pred_check
      _
    $region39: #{custom-call.8} parent=1 // pred_check_branch
      %305 = sbr.rel (0) target = $region41
    $region40: #{custom-call.8} parent=1 // pred_region
      %p307 = scmp.gt.s32.totalorder 2, 0
      // Predicated region
      $region42: #{custom-call.8} parent=40 // pred_check
        %p308 = pneg %p307
      $region43: #{custom-call.8} parent=40 // pred_check_branch
        %310 = sbr.rel (%p308) target = $region45
      $region44: #{custom-call.8} parent=40 // pred_region
        %s311 = ssub.s32 2, 1
        %s312 = smul.u32 %s311, 8
        %s313 = scalar_lea.vmem [#allocation1], %s312
        %v314 = vld [vmem:[#allocation1] sm:$0xff]
        // While loop
        $region46: #{custom-call.8} parent=44 // loop_pre_header
          _
        $region47: #{custom-call.8} parent=44 // loop_header
          %s315 = sphi [#allocation1], %s337
          %s316 = sphi %s1, %s338
          %v317 = vphi %v314, %v339
          %s318 = ssub.s32 %s313, 64
          %p319 = scmp.gt.s32.totalorder %s315, %s318
        $region48: #{custom-call.8} parent=44 // loop_header_branch
          %321 = sbr.rel (%p319) target = $region52
        $region49: #{custom-call.8} parent=44 // loop_body
          %322 = vst [vmem:[%s316] sm:$0xff] %v317
          %v323 = vld [vmem:[%s315 + $0x8] sm:$0xff]
          %324 = vst [vmem:[%s316 + $0x8] sm:$0xff] %v323
          %v325 = vld [vmem:[%s315 + $0x10] sm:$0xff]
          %326 = vst [vmem:[%s316 + $0x10] sm:$0xff] %v325
          %v327 = vld [vmem:[%s315 + $0x18] sm:$0xff]
          %328 = vst [vmem:[%s316 + $0x18] sm:$0xff] %v327
          %v329 = vld [vmem:[%s315 + $0x20] sm:$0xff]
          %330 = vst [vmem:[%s316 + $0x20] sm:$0xff] %v329
          %v331 = vld [vmem:[%s315 + $0x28] sm:$0xff]
          %332 = vst [vmem:[%s316 + $0x28] sm:$0xff] %v331
          %v333 = vld [vmem:[%s315 + $0x30] sm:$0xff]
          %334 = vst [vmem:[%s316 + $0x30] sm:$0xff] %v333
          %v335 = vld [vmem:[%s315 + $0x38] sm:$0xff]
          %336 = vst [vmem:[%s316 + $0x38] sm:$0xff] %v335
        $region50: #{custom-call.8} parent=44 // loop_footer
          %s337 = scalar_lea.vmem %s315, 64
          %s338 = scalar_lea.vmem %s316, 64
          %v339 = vld [vmem:[%s315 + $0x40] sm:$0xff]
        $region51: #{custom-call.8} parent=44 // loop_footer_branch
          %340 = sbr.rel target = $region47
        $region52: #{custom-call.8} parent=44 // loop_exit
          _
        // While loop
        $region53: #{custom-call.8} parent=44 // loop_pre_header
          _
        $region54: #{custom-call.8} parent=44 // loop_header
          %s341 = sphi %s315, %s349
          %s342 = sphi %s316, %s350
          %v343 = vphi %v317, %v343
          %p344 = scmp.gt.s32.totalorder %s341, %s313
        $region55: #{custom-call.8} parent=44 // loop_header_branch
          %346 = sbr.rel (%p344) target = $region59
        $region56: #{custom-call.8} parent=44 // loop_body
          %v347 = vld [vmem:[%s341] sm:$0xff]
          %348 = vst [vmem:[%s342] sm:$0xff] %v347
        $region57: #{custom-call.8} parent=44 // loop_footer
          %s349 = scalar_lea.vmem %s341, 8
          %s350 = scalar_lea.vmem %s342, 8
        $region58: #{custom-call.8} parent=44 // loop_footer_branch
          %351 = sbr.rel target = $region54
        $region59: #{custom-call.8} parent=44 // loop_exit
          _
      $region45: #{custom-call.8} parent=40 // pred_fallthru
        _
      %s353 = ssub.s32 1, 1
      %s354 = smul.u32 2, 8
      %s355 = scalar_lea.vmem %s1, %s354
      %s356 = smul.u32 2, 8
      %s357 = scalar_lea.vmem [#allocation1], %s356
      %v358 = vld [vmem:[%s357] sm:%s353]
      %359 = vst [vmem:[%s355] sm:%s353] %v358
    $region41: #{custom-call.8} parent=1 // pred_fallthru
      _
    // Predicated region
    $region60: #{custom-call.8} parent=1 // pred_check
      _
    $region61: #{custom-call.8} parent=1 // pred_check_branch
      %361 = sbr.rel (0) target = $region63
    $region62: #{custom-call.8} parent=1 // pred_region
      %363 = vsyncadd [#allocation4], 0
      %s365 = sshll.u32 [#allocation3], 4
      %s366 = int_to_ptr.vmem [resolvable:$true] %s365
      %s367 = sshll.u32 %s2, 4
      %s368 = int_to_ptr.hbm [resolvable:$true] %s367
      %370 = dma.vmem_to_hbm [thread:$0]  %s366, 16, %s368, [#allocation4]
    $region63: #{custom-call.8} parent=1 // pred_fallthru
      _
    // Predicated region
    $region64: #{custom-call.8} parent=1 // pred_check
      _
    $region65: #{custom-call.8} parent=1 // pred_check_branch
      %372 = sbr.rel (0) target = $region67
    $region66: #{custom-call.8} parent=1 // pred_region
      // Predicated region
      $region68: #{custom-call.8} parent=66 // pred_check
        _
      $region69: #{custom-call.8} parent=66 // pred_check_branch
        %374 = sbr.rel (0) target = $region71
      $region70: #{custom-call.8} parent=66 // pred_region
        %p376 = scmp.gt.s32.totalorder 0, 0
        // Predicated region
        $region72: #{custom-call.8} parent=70 // pred_check
          %p377 = pneg %p376
        $region73: #{custom-call.8} parent=70 // pred_check_branch
          %379 = sbr.rel (%p377) target = $region75
        $region74: #{custom-call.8} parent=70 // pred_region
          %s380 = ssub.s32 0, 1
          %s381 = smul.u32 %s380, 8
          %s382 = scalar_lea.vmem [#allocation6], %s381
          %v383 = vld [vmem:[#allocation6] sm:$0xff]
          // While loop
          $region76: #{custom-call.8} parent=74 // loop_pre_header
            _
          $region77: #{custom-call.8} parent=74 // loop_header
            %s384 = sphi [#allocation6], %s406
            %s385 = sphi %s3, %s407
            %v386 = vphi %v383, %v408
            %s387 = ssub.s32 %s382, 64
            %p388 = scmp.gt.s32.totalorder %s384, %s387
          $region78: #{custom-call.8} parent=74 // loop_header_branch
            %390 = sbr.rel (%p388) target = $region82
          $region79: #{custom-call.8} parent=74 // loop_body
            %391 = vst [vmem:[%s385] sm:$0xff] %v386
            %v392 = vld [vmem:[%s384 + $0x8] sm:$0xff]
            %393 = vst [vmem:[%s385 + $0x8] sm:$0xff] %v392
            %v394 = vld [vmem:[%s384 + $0x10] sm:$0xff]
            %395 = vst [vmem:[%s385 + $0x10] sm:$0xff] %v394
            %v396 = vld [vmem:[%s384 + $0x18] sm:$0xff]
            %397 = vst [vmem:[%s385 + $0x18] sm:$0xff] %v396
            %v398 = vld [vmem:[%s384 + $0x20] sm:$0xff]
            %399 = vst [vmem:[%s385 + $0x20] sm:$0xff] %v398
            %v400 = vld [vmem:[%s384 + $0x28] sm:$0xff]
            %401 = vst [vmem:[%s385 + $0x28] sm:$0xff] %v400
            %v402 = vld [vmem:[%s384 + $0x30] sm:$0xff]
            %403 = vst [vmem:[%s385 + $0x30] sm:$0xff] %v402
            %v404 = vld [vmem:[%s384 + $0x38] sm:$0xff]
            %405 = vst [vmem:[%s385 + $0x38] sm:$0xff] %v404
          $region80: #{custom-call.8} parent=74 // loop_footer
            %s406 = scalar_lea.vmem %s384, 64
            %s407 = scalar_lea.vmem %s385, 64
            %v408 = vld [vmem:[%s384 + $0x40] sm:$0xff]
          $region81: #{custom-call.8} parent=74 // loop_footer_branch
            %409 = sbr.rel target = $region77
          $region82: #{custom-call.8} parent=74 // loop_exit
            _
          // While loop
          $region83: #{custom-call.8} parent=74 // loop_pre_header
            _
          $region84: #{custom-call.8} parent=74 // loop_header
            %s410 = sphi %s384, %s418
            %s411 = sphi %s385, %s419
            %v412 = vphi %v386, %v412
            %p413 = scmp.gt.s32.totalorder %s410, %s382
          $region85: #{custom-call.8} parent=74 // loop_header_branch
            %415 = sbr.rel (%p413) target = $region89
          $region86: #{custom-call.8} parent=74 // loop_body
            %v416 = vld [vmem:[%s410] sm:$0xff]
            %417 = vst [vmem:[%s411] sm:$0xff] %v416
          $region87: #{custom-call.8} parent=74 // loop_footer
            %s418 = scalar_lea.vmem %s410, 8
            %s419 = scalar_lea.vmem %s411, 8
          $region88: #{custom-call.8} parent=74 // loop_footer_branch
            %420 = sbr.rel target = $region84
          $region89: #{custom-call.8} parent=74 // loop_exit
            _
        $region75: #{custom-call.8} parent=70 // pred_fallthru
          _
        %s422 = ssub.s32 2, 1
        %s423 = smul.u32 0, 8
        %s424 = scalar_lea.vmem %s3, %s423
        %s425 = smul.u32 0, 8
        %s426 = scalar_lea.vmem [#allocation6], %s425
        %v427 = vld [vmem:[%s426] sm:%s422]
        %428 = vst [vmem:[%s424] sm:%s422] %v427
      $region71: #{custom-call.8} parent=66 // pred_fallthru
        _
    $region67: #{custom-call.8} parent=1 // pred_fallthru
      _
    // Predicated region
    $region90: #{custom-call.8} parent=1 // pred_check
      _
    $region91: #{custom-call.8} parent=1 // pred_check_branch
      %430 = sbr.rel (0) target = $region93
    $region92: #{custom-call.8} parent=1 // pred_region
      %432 = dma.done [#allocation4], 16
    $region93: #{custom-call.8} parent=1 // pred_fallthru
      _
    // Predicated region
    $region94: #{custom-call.8} parent=1 // pred_check
      _
    $region95: #{custom-call.8} parent=1 // pred_check_branch
      %434 = sbr.rel (0) target = $region97
    $region96: #{custom-call.8} parent=1 // pred_region
      _
    $region97: #{custom-call.8} parent=1 // pred_fallthru
      _
    %435 = vsyncpa [#allocation4], 1

// kernel: custom-call.10
$region0: #{custom-call.10}
  %s0 = inlined_call_operand.vmem [shape: f32[1,16,16], index: 0, kind: input, shape index: {}]
  %s1 = inlined_call_operand.vmem [shape: f32[1,16,16], index: 1, kind: output, shape index: {}]
  $region1: #{custom-call.10} parent=0
    #allocation0 [shape = 'u8[8192]{0}', space=vmem, size = 0x2000, scoped, tag = 'operand span for operand 0']
    #allocation1 [shape = 'u8[8192]{0}', space=vmem, size = 0x2000, scoped, tag = 'operand span for operand 1']
    #allocation2 [shape = 'f32[16,16]{1,0}', space=vmem, size = 0x2000, scoped, tag = 'rescaled input a']
    // Predicated region
    $region2: #{custom-call.10} parent=1 // pred_check
      _
    $region3: #{custom-call.10} parent=1 // pred_check_branch
      %3 = sbr.rel (0) target = $region5
    $region4: #{custom-call.10} parent=1 // pred_region
      // Predicated region
      $region6: #{custom-call.10} parent=4 // pred_check
        _
      $region7: #{custom-call.10} parent=4 // pred_check_branch
        %5 = sbr.rel (0) target = $region9
      $region8: #{custom-call.10} parent=4 // pred_region
        // Predicated region
        $region21: #{custom-call.10} parent=8 // pred_check
          _
        $region22: #{custom-call.10} parent=8 // pred_check_branch
          %23 = sbr.rel (0) target = $region24
        $region23: #{custom-call.10} parent=8 // pred_region
          loop: start=0, step=1, limit=1
          $region25: #{custom-call.10} parent=23 // loop_pre_header
            _
          $region26: #{custom-call.10} parent=23 // loop_header
            %s25 = sphi 0, %s29
            %p26 = scmp.ge.s32.totalorder %s25, 1
            %s30 = sphi %s0, %s0
            %s31 = sphi [#allocation0], [#allocation0]
          $region27: #{custom-call.10} parent=23 // loop_header_branch
            %28 = sbr.rel (%p26) target = $region31
          $region28: #{custom-call.10} parent=23 // loop_body
            %v32 = vld [vmem:[%s30] sm:$0xff]
            %33 = vst [vmem:[%s31] sm:$0xff] %v32
            %v34 = vld [vmem:[%s30 + $0x8] sm:$0xff]
            %35 = vst [vmem:[%s31 + $0x8] sm:$0xff] %v34
          $region29: #{custom-call.10} parent=23 // loop_footer
            %s29 = sadd.s32 1, %s25
          $region30: #{custom-call.10} parent=23 // loop_footer_branch
            %24 = sbr.rel target = $region26
          $region31: #{custom-call.10} parent=23 // loop_exit
            _
        $region24: #{custom-call.10} parent=8 // pred_fallthru
          _
        // Predicated region
        $region32: #{custom-call.10} parent=8 // pred_check
          _
        $region33: #{custom-call.10} parent=8 // pred_check_branch
          %37 = sbr.rel target = $region35
        $region34: #{custom-call.10} parent=8 // pred_region
          _
        $region35: #{custom-call.10} parent=8 // pred_fallthru
          _
      $region9: #{custom-call.10} parent=4 // pred_fallthru
        _
      // Predicated region
      $region10: #{custom-call.10} parent=4 // pred_check
        _
      $region11: #{custom-call.10} parent=4 // pred_check_branch
        %7 = sbr.rel target = $region13
      $region12: #{custom-call.10} parent=4 // pred_region
        %s9 = ssub.s32 256, 1
        loop: start=0, step=1, limit=1
        $region14: #{custom-call.10} parent=12 // loop_pre_header
          _
        $region15: #{custom-call.10} parent=12 // loop_header
          %s11 = sphi 0, %s15
          %p12 = scmp.ge.s32.totalorder %s11, 1
          %s16 = sphi %s0, %s0
          %s17 = sphi [#allocation0], [#allocation0]
        $region16: #{custom-call.10} parent=12 // loop_header_branch
          %14 = sbr.rel (%p12) target = $region20
        $region17: #{custom-call.10} parent=12 // loop_body
          %v18 = vld [vmem:[%s16] sm:%s9]
          %19 = vst [vmem:[%s17] sm:%s9] %v18
          %v20 = vld [vmem:[%s16 + $0x8] sm:%s9]
          %21 = vst [vmem:[%s17 + $0x8] sm:%s9] %v20
        $region18: #{custom-call.10} parent=12 // loop_footer
          %s15 = sadd.s32 1, %s11
        $region19: #{custom-call.10} parent=12 // loop_footer_branch
          %10 = sbr.rel target = $region15
        $region20: #{custom-call.10} parent=12 // loop_exit
          _
      $region13: #{custom-call.10} parent=4 // pred_fallthru
        _
    $region5: #{custom-call.10} parent=1 // pred_fallthru
      _
    %38 = vnop
    %v39 = vlaneseq
    %v40 = vand.u32 %v39, 127
    %vm41 = vcmp.lt.s32.totalorder %v40, 16
    %v42 = vlaneseq
    %v43 = vshrl.u32 %v42, 7
    %vm45 = vcmp.eq.s32.totalorder %v43, %v40
    %v46 = vld [vmem:[#allocation0] sm:$0xff]
    %v47 = vsel %vm45, %v46, 0.0
    %48 = vadd.xlane.f32.xlu0 %v47
    %v49 = vpop.xlane.xlu0 %48
    %vm50 = vcmp.ge.s32.totalorder %v43, %v40
    %vm51 = vmand %vm50, %vm41
    %v52 = vsel %vm51, %v46, 0.0
    %v53 = vrcp.pop %v49
    %v54 = vmul.f32 %v49, %v53
    %v55 = vsub.f32 1.0, %v54
    %v56 = vmul.f32 %v53, %v55
    %v57 = vadd.f32 %v53, %v56
    %vm58 = vweird.f32 %v49
    %vm59 = vweird.f32 %v53
    %vm60 = vmor %vm58, %vm59
    %v61 = vsel %vm60, %v53, %v57
    %v62 = vand.u32 2147483647, %v49
    %vm63 = vcmp.eq.f32.partialorder %v62, 8.507059e+37
    %v64 = vand.u32 %v49, 2147483648
    %v65 = vor.u32 1.1754944e-38, %v64
    %v66 = vsel %vm63, %v65, %v61
    %v67 = vmul.f32 %v52, %v66
    %68 = vst [vmem:[#allocation2] sm:$0xff] %v67
    %s69 = scalar_lea.vmem [#allocation0], 8
    %s70 = scalar_lea.vmem [#allocation2], 8
    %v71 = vlaneseq
    %v72 = vshrl.u32 %v71, 7
    %v73 = vadd.s32 %v72, 8
    %vm74 = vcmp.eq.s32.totalorder %v73, %v40
    %v75 = vld [vmem:[%s69] sm:$0xff]
    %v76 = vsel %vm74, %v75, 0.0
    %77 = vadd.xlane.f32.xlu0 %v76
    %v78 = vpop.xlane.xlu0 %77
    %vm79 = vcmp.ge.s32.totalorder %v73, %v40
    %vm80 = vmand %vm79, %vm41
    %v81 = vsel %vm80, %v75, 0.0
    %v82 = vrcp.pop %v78
    %v83 = vmul.f32 %v78, %v82
    %v84 = vsub.f32 1.0, %v83
    %v85 = vmul.f32 %v82, %v84
    %v86 = vadd.f32 %v82, %v85
    %vm87 = vweird.f32 %v78
    %vm88 = vweird.f32 %v82
    %vm89 = vmor %vm87, %vm88
    %v90 = vsel %vm89, %v82, %v86
    %v91 = vand.u32 2147483647, %v78
    %vm92 = vcmp.eq.f32.partialorder %v91, 8.507059e+37
    %v93 = vand.u32 %v78, 2147483648
    %v94 = vor.u32 1.1754944e-38, %v93
    %v95 = vsel %vm92, %v94, %v90
    %v96 = vmul.f32 %v81, %v95
    %97 = vst [vmem:[%s70] sm:$0xff] %v96
    %v98 = vlaneseq
    %v99 = vand.u32 %v98, 127
    %v100 = vlaneseq
    %v101 = vshrl.u32 %v100, 7
    %vm103 = vcmp.eq.s32.totalorder %v99, %v101
    %v104 = vlaneseq
    %v105 = vand.u32 %v104, 127
    %vm106 = vcmp.eq.s32.totalorder %v105, 0
    %v107 = vsel %vm106, 1.0, -1.0
    %v108 = vsel %vm103, %v107, 0.0
    %v109 = vlaneseq
    %v110 = vand.u32 %v109, 127
    %v111 = vlaneseq
    %v112 = vshrl.u32 %v111, 7
    %v113 = vadd.s32 %v112, 8
    %vm114 = vcmp.eq.s32.totalorder %v110, %v113
    %v115 = vsel %vm114, -1.0, 0.0
    %s116 = scalar_lea.vmem [#allocation2], 1
    %v117 = vld [vmem:[%s116] ss:$0 sm:$0xff]
    %v118 = vxor.u32 %v117, 2147483648
    %v119 = vlaneseq
    %v120 = vand.u32 %v119, 127
    %vm121 = vcmp.eq.s32.totalorder %v120, 1
    %v122 = vmul.f32 %v118, %v108
    %123 = vadd.xlane.f32.xlu0 %v122
    %v124 = vpop.xlane.xlu0 %123
    %v125 = vsel %vm121, %v124, %v108
    %s126 = scalar_lea.vmem [#allocation2], 2
    %v127 = vld [vmem:[%s126] ss:$0 sm:$0xff]
    %v128 = vxor.u32 %v127, 2147483648
    %v129 = vlaneseq
    %v130 = vand.u32 %v129, 127
    %vm131 = vcmp.eq.s32.totalorder %v130, 2
    %v132 = vmul.f32 %v128, %v125
    %133 = vadd.xlane.f32.xlu0 %v132
    %v134 = vpop.xlane.xlu0 %133
    %v135 = vsel %vm131, %v134, %v125
    %s136 = scalar_lea.vmem [#allocation2], 3
    %v137 = vld [vmem:[%s136] ss:$0 sm:$0xff]
    %v138 = vxor.u32 %v137, 2147483648
    %v139 = vlaneseq
    %v140 = vand.u32 %v139, 127
    %vm141 = vcmp.eq.s32.totalorder %v140, 3
    %v142 = vmul.f32 %v138, %v135
    %143 = vadd.xlane.f32.xlu0 %v142
    %v144 = vpop.xlane.xlu0 %143
    %v145 = vsel %vm141, %v144, %v135
    %s146 = scalar_lea.vmem [#allocation2], 4
    %v147 = vld [vmem:[%s146] ss:$0 sm:$0xff]
    %v148 = vxor.u32 %v147, 2147483648
    %v149 = vlaneseq
    %v150 = vand.u32 %v149, 127
    %vm151 = vcmp.eq.s32.totalorder %v150, 4
    %v152 = vmul.f32 %v148, %v145
    %153 = vadd.xlane.f32.xlu0 %v152
    %v154 = vpop.xlane.xlu0 %153
    %v155 = vsel %vm151, %v154, %v145
    %s156 = scalar_lea.vmem [#allocation2], 5
    %v157 = vld [vmem:[%s156] ss:$0 sm:$0xff]
    %v158 = vxor.u32 %v157, 2147483648
    %v159 = vlaneseq
    %v160 = vand.u32 %v159, 127
    %vm161 = vcmp.eq.s32.totalorder %v160, 5
    %v162 = vmul.f32 %v158, %v155
    %163 = vadd.xlane.f32.xlu0 %v162
    %v164 = vpop.xlane.xlu0 %163
    %v165 = vsel %vm161, %v164, %v155
    %s166 = scalar_lea.vmem [#allocation2], 6
    %v167 = vld [vmem:[%s166] ss:$0 sm:$0xff]
    %v168 = vxor.u32 %v167, 2147483648
    %v169 = vlaneseq
    %v170 = vand.u32 %v169, 127
    %vm171 = vcmp.eq.s32.totalorder %v170, 6
    %v172 = vmul.f32 %v168, %v165
    %173 = vadd.xlane.f32.xlu0 %v172
    %v174 = vpop.xlane.xlu0 %173
    %v175 = vsel %vm171, %v174, %v165
    %s176 = scalar_lea.vmem [#allocation2], 7
    %v177 = vld [vmem:[%s176] ss:$0 sm:$0xff]
    %v178 = vxor.u32 %v177, 2147483648
    %v179 = vlaneseq
    %v180 = vand.u32 %v179, 127
    %vm181 = vcmp.eq.s32.totalorder %v180, 7
    %v182 = vmul.f32 %v178, %v175
    %183 = vadd.xlane.f32.xlu0 %v182
    %v184 = vpop.xlane.xlu0 %183
    %v185 = vsel %vm181, %v184, %v175
    %s186 = scalar_lea.vmem [#allocation2], 8
    %v187 = vld [vmem:[%s186] ss:$0 sm:$0xff]
    %v188 = vxor.u32 %v187, 2147483648
    %v189 = vlaneseq
    %v190 = vand.u32 %v189, 127
    %vm191 = vcmp.eq.s32.totalorder %v190, 8
    %v192 = vmul.f32 %v188, %v185
    %193 = vadd.xlane.f32.xlu0 %v192
    %v194 = vpop.xlane.xlu0 %193
    %v195 = vsel %vm191, %v194, %v185
    %v196 = vmul.f32 %v188, %v115
    %197 = vadd.xlane.f32.xlu0 %v196
    %v198 = vpop.xlane.xlu0 %197
    %v199 = vsel %vm191, %v198, %v115
    %s200 = scalar_lea.vmem [#allocation2], 9
    %v201 = vld [vmem:[%s200] ss:$0 sm:$0xff]
    %v202 = vxor.u32 %v201, 2147483648
    %v203 = vlaneseq
    %v204 = vand.u32 %v203, 127
    %vm205 = vcmp.eq.s32.totalorder %v204, 9
    %v206 = vmul.f32 %v202, %v195
    %207 = vadd.xlane.f32.xlu0 %v206
    %v208 = vpop.xlane.xlu0 %207
    %v209 = vsel %vm205, %v208, %v195
    %v210 = vmul.f32 %v202, %v199
    %211 = vadd.xlane.f32.xlu0 %v210
    %v212 = vpop.xlane.xlu0 %211
    %v213 = vsel %vm205, %v212, %v199
    %s214 = scalar_lea.vmem [#allocation2], 10
    %v215 = vld [vmem:[%s214] ss:$0 sm:$0xff]
    %v216 = vxor.u32 %v215, 2147483648
    %v217 = vlaneseq
    %v218 = vand.u32 %v217, 127
    %vm219 = vcmp.eq.s32.totalorder %v218, 10
    %v220 = vmul.f32 %v216, %v209
    %221 = vadd.xlane.f32.xlu0 %v220
    %v222 = vpop.xlane.xlu0 %221
    %v223 = vsel %vm219, %v222, %v209
    %v224 = vmul.f32 %v216, %v213
    %225 = vadd.xlane.f32.xlu0 %v224
    %v226 = vpop.xlane.xlu0 %225
    %v227 = vsel %vm219, %v226, %v213
    %s228 = scalar_lea.vmem [#allocation2], 11
    %v229 = vld [vmem:[%s228] ss:$0 sm:$0xff]
    %v230 = vxor.u32 %v229, 2147483648
    %v231 = vlaneseq
    %v232 = vand.u32 %v231, 127
    %vm233 = vcmp.eq.s32.totalorder %v232, 11
    %v234 = vmul.f32 %v230, %v223
    %235 = vadd.xlane.f32.xlu0 %v234
    %v236 = vpop.xlane.xlu0 %235
    %v237 = vsel %vm233, %v236, %v223
    %v238 = vmul.f32 %v230, %v227
    %239 = vadd.xlane.f32.xlu0 %v238
    %v240 = vpop.xlane.xlu0 %239
    %v241 = vsel %vm233, %v240, %v227
    %s242 = scalar_lea.vmem [#allocation2], 12
    %v243 = vld [vmem:[%s242] ss:$0 sm:$0xff]
    %v244 = vxor.u32 %v243, 2147483648
    %v245 = vlaneseq
    %v246 = vand.u32 %v245, 127
    %vm247 = vcmp.eq.s32.totalorder %v246, 12
    %v248 = vmul.f32 %v244, %v237
    %249 = vadd.xlane.f32.xlu0 %v248
    %v250 = vpop.xlane.xlu0 %249
    %v251 = vsel %vm247, %v250, %v237
    %v252 = vmul.f32 %v244, %v241
    %253 = vadd.xlane.f32.xlu0 %v252
    %v254 = vpop.xlane.xlu0 %253
    %v255 = vsel %vm247, %v254, %v241
    %s256 = scalar_lea.vmem [#allocation2], 13
    %v257 = vld [vmem:[%s256] ss:$0 sm:$0xff]
    %v258 = vxor.u32 %v257, 2147483648
    %v259 = vlaneseq
    %v260 = vand.u32 %v259, 127
    %vm261 = vcmp.eq.s32.totalorder %v260, 13
    %v262 = vmul.f32 %v258, %v251
    %263 = vadd.xlane.f32.xlu0 %v262
    %v264 = vpop.xlane.xlu0 %263
    %v265 = vsel %vm261, %v264, %v251
    %v266 = vmul.f32 %v258, %v255
    %267 = vadd.xlane.f32.xlu0 %v266
    %v268 = vpop.xlane.xlu0 %267
    %v269 = vsel %vm261, %v268, %v255
    %s270 = scalar_lea.vmem [#allocation2], 14
    %v271 = vld [vmem:[%s270] ss:$0 sm:$0xff]
    %v272 = vxor.u32 %v271, 2147483648
    %v273 = vlaneseq
    %v274 = vand.u32 %v273, 127
    %vm275 = vcmp.eq.s32.totalorder %v274, 14
    %v276 = vmul.f32 %v272, %v265
    %277 = vadd.xlane.f32.xlu0 %v276
    %v278 = vpop.xlane.xlu0 %277
    %v279 = vsel %vm275, %v278, %v265
    %v280 = vmul.f32 %v272, %v269
    %281 = vadd.xlane.f32.xlu0 %v280
    %v282 = vpop.xlane.xlu0 %281
    %v283 = vsel %vm275, %v282, %v269
    %s284 = scalar_lea.vmem [#allocation2], 15
    %v285 = vld [vmem:[%s284] ss:$0 sm:$0xff]
    %v286 = vxor.u32 %v285, 2147483648
    %v287 = vlaneseq
    %v288 = vand.u32 %v287, 127
    %vm289 = vcmp.eq.s32.totalorder %v288, 15
    %v290 = vmul.f32 %v286, %v279
    %291 = vadd.xlane.f32.xlu0 %v290
    %v292 = vpop.xlane.xlu0 %291
    %v293 = vsel %vm289, %v292, %v279
    %v294 = vmul.f32 %v286, %v283
    %295 = vadd.xlane.f32.xlu0 %v294
    %v296 = vpop.xlane.xlu0 %295
    %v297 = vsel %vm289, %v296, %v283
    %v298 = vrcp.pop %v49
    %v299 = vmul.f32 %v49, %v298
    %v300 = vsub.f32 1.0, %v299
    %v301 = vmul.f32 %v298, %v300
    %v302 = vadd.f32 %v298, %v301
    %vm303 = vweird.f32 %v49
    %vm304 = vweird.f32 %v298
    %vm305 = vmor %vm303, %vm304
    %v306 = vsel %vm305, %v298, %v302
    %v307 = vand.u32 2147483647, %v49
    %vm308 = vcmp.eq.f32.partialorder %v307, 8.507059e+37
    %v309 = vand.u32 %v49, 2147483648
    %v310 = vor.u32 1.1754944e-38, %v309
    %v311 = vsel %vm308, %v310, %v306
    %v312 = vmul.f32 %v293, %v311
    %vm313 = vweird.f32 %v49
    %v314 = vsel %vm313, %v293, %v312
    %315 = vst [vmem:[#allocation1] sm:$0xff] %v314
    %v316 = vrcp.pop %v78
    %v317 = vmul.f32 %v78, %v316
    %v318 = vsub.f32 1.0, %v317
    %v319 = vmul.f32 %v316, %v318
    %v320 = vadd.f32 %v316, %v319
    %vm321 = vweird.f32 %v78
    %vm322 = vweird.f32 %v316
    %vm323 = vmor %vm321, %vm322
    %v324 = vsel %vm323, %v316, %v320
    %v325 = vand.u32 2147483647, %v78
    %vm326 = vcmp.eq.f32.partialorder %v325, 8.507059e+37
    %v327 = vand.u32 %v78, 2147483648
    %v328 = vor.u32 1.1754944e-38, %v327
    %v329 = vsel %vm326, %v328, %v324
    %v330 = vmul.f32 %v297, %v329
    %vm331 = vweird.f32 %v78
    %v332 = vsel %vm331, %v297, %v330
    %s333 = scalar_lea.vmem [#allocation1], 8
    %334 = vst [vmem:[%s333] sm:$0xff] %v332
    // Predicated region
    $region36: #{custom-call.10} parent=1 // pred_check
      _
    $region37: #{custom-call.10} parent=1 // pred_check_branch
      %336 = sbr.rel (0) target = $region39
    $region38: #{custom-call.10} parent=1 // pred_region
      // Predicated region
      $region40: #{custom-call.10} parent=38 // pred_check
        _
      $region41: #{custom-call.10} parent=38 // pred_check_branch
        %338 = sbr.rel (0) target = $region43
      $region42: #{custom-call.10} parent=38 // pred_region
        // Predicated region
        $region55: #{custom-call.10} parent=42 // pred_check
          _
        $region56: #{custom-call.10} parent=42 // pred_check_branch
          %356 = sbr.rel (0) target = $region58
        $region57: #{custom-call.10} parent=42 // pred_region
          loop: start=0, step=1, limit=1
          $region59: #{custom-call.10} parent=57 // loop_pre_header
            _
          $region60: #{custom-call.10} parent=57 // loop_header
            %s358 = sphi 0, %s362
            %p359 = scmp.ge.s32.totalorder %s358, 1
            %s363 = sphi [#allocation1], [#allocation1]
            %s364 = sphi %s1, %s1
          $region61: #{custom-call.10} parent=57 // loop_header_branch
            %361 = sbr.rel (%p359) target = $region65
          $region62: #{custom-call.10} parent=57 // loop_body
            %v365 = vld [vmem:[%s363] sm:$0xff]
            %366 = vst [vmem:[%s364] sm:$0xff] %v365
            %v367 = vld [vmem:[%s363 + $0x8] sm:$0xff]
            %368 = vst [vmem:[%s364 + $0x8] sm:$0xff] %v367
          $region63: #{custom-call.10} parent=57 // loop_footer
            %s362 = sadd.s32 1, %s358
          $region64: #{custom-call.10} parent=57 // loop_footer_branch
            %357 = sbr.rel target = $region60
          $region65: #{custom-call.10} parent=57 // loop_exit
            _
        $region58: #{custom-call.10} parent=42 // pred_fallthru
          _
        // Predicated region
        $region66: #{custom-call.10} parent=42 // pred_check
          _
        $region67: #{custom-call.10} parent=42 // pred_check_branch
          %370 = sbr.rel target = $region69
        $region68: #{custom-call.10} parent=42 // pred_region
          _
        $region69: #{custom-call.10} parent=42 // pred_fallthru
          _
      $region43: #{custom-call.10} parent=38 // pred_fallthru
        _
      // Predicated region
      $region44: #{custom-call.10} parent=38 // pred_check
        _
      $region45: #{custom-call.10} parent=38 // pred_check_branch
        %340 = sbr.rel target = $region47
      $region46: #{custom-call.10} parent=38 // pred_region
        %s342 = ssub.s32 256, 1
        loop: start=0, step=1, limit=1
        $region48: #{custom-call.10} parent=46 // loop_pre_header
          _
        $region49: #{custom-call.10} parent=46 // loop_header
          %s344 = sphi 0, %s348
          %p345 = scmp.ge.s32.totalorder %s344, 1
          %s349 = sphi [#allocation1], [#allocation1]
          %s350 = sphi %s1, %s1
        $region50: #{custom-call.10} parent=46 // loop_header_branch
          %347 = sbr.rel (%p345) target = $region54
        $region51: #{custom-call.10} parent=46 // loop_body
          %v351 = vld [vmem:[%s349] sm:%s342]
          %352 = vst [vmem:[%s350] sm:%s342] %v351
          %v353 = vld [vmem:[%s349 + $0x8] sm:%s342]
          %354 = vst [vmem:[%s350 + $0x8] sm:%s342] %v353
        $region52: #{custom-call.10} parent=46 // loop_footer
          %s348 = sadd.s32 1, %s344
        $region53: #{custom-call.10} parent=46 // loop_footer_branch
          %343 = sbr.rel target = $region49
        $region54: #{custom-call.10} parent=46 // loop_exit
          _
      $region47: #{custom-call.10} parent=38 // pred_fallthru
        _
    $region39: #{custom-call.10} parent=1 // pred_fallthru
      _
    %371 = vnop

// kernel: custom-call.9
$region0: #{custom-call.9}
  %s0 = inlined_call_operand.vmem [shape: f32[1,16,16], index: 0, kind: input, shape index: {}]
  %s1 = inlined_call_operand.vmem [shape: f32[1,16,16], index: 1, kind: output, shape index: {}]
  $region1: #{custom-call.9} parent=0
    #allocation0 [shape = 'u8[8192]{0}', space=vmem, size = 0x2000, scoped, tag = 'operand span for operand 0']
    #allocation1 [shape = 'u8[8192]{0}', space=vmem, size = 0x2000, scoped, tag = 'operand span for operand 1']
    #allocation2 [shape = 'f32[16,16]{1,0}', space=vmem, size = 0x2000, scoped, tag = 'rescaled input a']
    // Predicated region
    $region2: #{custom-call.9} parent=1 // pred_check
      _
    $region3: #{custom-call.9} parent=1 // pred_check_branch
      %3 = sbr.rel (0) target = $region5
    $region4: #{custom-call.9} parent=1 // pred_region
      // Predicated region
      $region6: #{custom-call.9} parent=4 // pred_check
        _
      $region7: #{custom-call.9} parent=4 // pred_check_branch
        %5 = sbr.rel (0) target = $region9
      $region8: #{custom-call.9} parent=4 // pred_region
        // Predicated region
        $region21: #{custom-call.9} parent=8 // pred_check
          _
        $region22: #{custom-call.9} parent=8 // pred_check_branch
          %23 = sbr.rel (0) target = $region24
        $region23: #{custom-call.9} parent=8 // pred_region
          loop: start=0, step=1, limit=1
          $region25: #{custom-call.9} parent=23 // loop_pre_header
            _
          $region26: #{custom-call.9} parent=23 // loop_header
            %s25 = sphi 0, %s29
            %p26 = scmp.ge.s32.totalorder %s25, 1
            %s30 = sphi %s0, %s0
            %s31 = sphi [#allocation0], [#allocation0]
          $region27: #{custom-call.9} parent=23 // loop_header_branch
            %28 = sbr.rel (%p26) target = $region31
          $region28: #{custom-call.9} parent=23 // loop_body
            %v32 = vld [vmem:[%s30] sm:$0xff]
            %33 = vst [vmem:[%s31] sm:$0xff] %v32
            %v34 = vld [vmem:[%s30 + $0x8] sm:$0xff]
            %35 = vst [vmem:[%s31 + $0x8] sm:$0xff] %v34
          $region29: #{custom-call.9} parent=23 // loop_footer
            %s29 = sadd.s32 1, %s25
          $region30: #{custom-call.9} parent=23 // loop_footer_branch
            %24 = sbr.rel target = $region26
          $region31: #{custom-call.9} parent=23 // loop_exit
            _
        $region24: #{custom-call.9} parent=8 // pred_fallthru
          _
        // Predicated region
        $region32: #{custom-call.9} parent=8 // pred_check
          _
        $region33: #{custom-call.9} parent=8 // pred_check_branch
          %37 = sbr.rel target = $region35
        $region34: #{custom-call.9} parent=8 // pred_region
          _
        $region35: #{custom-call.9} parent=8 // pred_fallthru
          _
      $region9: #{custom-call.9} parent=4 // pred_fallthru
        _
      // Predicated region
      $region10: #{custom-call.9} parent=4 // pred_check
        _
      $region11: #{custom-call.9} parent=4 // pred_check_branch
        %7 = sbr.rel target = $region13
      $region12: #{custom-call.9} parent=4 // pred_region
        %s9 = ssub.s32 256, 1
        loop: start=0, step=1, limit=1
        $region14: #{custom-call.9} parent=12 // loop_pre_header
          _
        $region15: #{custom-call.9} parent=12 // loop_header
          %s11 = sphi 0, %s15
          %p12 = scmp.ge.s32.totalorder %s11, 1
          %s16 = sphi %s0, %s0
          %s17 = sphi [#allocation0], [#allocation0]
        $region16: #{custom-call.9} parent=12 // loop_header_branch
          %14 = sbr.rel (%p12) target = $region20
        $region17: #{custom-call.9} parent=12 // loop_body
          %v18 = vld [vmem:[%s16] sm:%s9]
          %19 = vst [vmem:[%s17] sm:%s9] %v18
          %v20 = vld [vmem:[%s16 + $0x8] sm:%s9]
          %21 = vst [vmem:[%s17 + $0x8] sm:%s9] %v20
        $region18: #{custom-call.9} parent=12 // loop_footer
          %s15 = sadd.s32 1, %s11
        $region19: #{custom-call.9} parent=12 // loop_footer_branch
          %10 = sbr.rel target = $region15
        $region20: #{custom-call.9} parent=12 // loop_exit
          _
      $region13: #{custom-call.9} parent=4 // pred_fallthru
        _
    $region5: #{custom-call.9} parent=1 // pred_fallthru
      _
    %38 = vnop
    %v39 = vlaneseq
    %v40 = vand.u32 %v39, 127
    %vm41 = vcmp.lt.s32.totalorder %v40, 16
    %v42 = vlaneseq
    %v43 = vshrl.u32 %v42, 7
    %vm45 = vcmp.eq.s32.totalorder %v43, %v40
    %v46 = vld [vmem:[#allocation0] sm:$0xff]
    %v47 = vsel %vm45, %v46, 0.0
    %48 = vadd.xlane.f32.xlu0 %v47
    %v49 = vpop.xlane.xlu0 %48
    %vm50 = vcmp.le.s32.totalorder %v43, %v40
    %vm51 = vmand %vm50, %vm41
    %v52 = vsel %vm51, %v46, 0.0
    %v53 = vrcp.pop %v49
    %v54 = vmul.f32 %v49, %v53
    %v55 = vsub.f32 1.0, %v54
    %v56 = vmul.f32 %v53, %v55
    %v57 = vadd.f32 %v53, %v56
    %vm58 = vweird.f32 %v49
    %vm59 = vweird.f32 %v53
    %vm60 = vmor %vm58, %vm59
    %v61 = vsel %vm60, %v53, %v57
    %v62 = vand.u32 2147483647, %v49
    %vm63 = vcmp.eq.f32.partialorder %v62, 8.507059e+37
    %v64 = vand.u32 %v49, 2147483648
    %v65 = vor.u32 1.1754944e-38, %v64
    %v66 = vsel %vm63, %v65, %v61
    %v67 = vmul.f32 %v52, %v66
    %68 = vst [vmem:[#allocation2] sm:$0xff] %v67
    %s69 = scalar_lea.vmem [#allocation0], 8
    %s70 = scalar_lea.vmem [#allocation2], 8
    %v71 = vlaneseq
    %v72 = vshrl.u32 %v71, 7
    %v73 = vadd.s32 %v72, 8
    %vm74 = vcmp.eq.s32.totalorder %v73, %v40
    %v75 = vld [vmem:[%s69] sm:$0xff]
    %v76 = vsel %vm74, %v75, 0.0
    %77 = vadd.xlane.f32.xlu0 %v76
    %v78 = vpop.xlane.xlu0 %77
    %vm79 = vcmp.le.s32.totalorder %v73, %v40
    %vm80 = vmand %vm79, %vm41
    %v81 = vsel %vm80, %v75, 0.0
    %v82 = vrcp.pop %v78
    %v83 = vmul.f32 %v78, %v82
    %v84 = vsub.f32 1.0, %v83
    %v85 = vmul.f32 %v82, %v84
    %v86 = vadd.f32 %v82, %v85
    %vm87 = vweird.f32 %v78
    %vm88 = vweird.f32 %v82
    %vm89 = vmor %vm87, %vm88
    %v90 = vsel %vm89, %v82, %v86
    %v91 = vand.u32 2147483647, %v78
    %vm92 = vcmp.eq.f32.partialorder %v91, 8.507059e+37
    %v93 = vand.u32 %v78, 2147483648
    %v94 = vor.u32 1.1754944e-38, %v93
    %v95 = vsel %vm92, %v94, %v90
    %v96 = vmul.f32 %v81, %v95
    %97 = vst [vmem:[%s70] sm:$0xff] %v96
    %v98 = vlaneseq
    %v99 = vand.u32 %v98, 127
    %v100 = vlaneseq
    %v101 = vshrl.u32 %v100, 7
    %vm103 = vcmp.eq.s32.totalorder %v99, %v101
    %v104 = vsel %vm103, -1.0, 0.0
    %v105 = vlaneseq
    %v106 = vand.u32 %v105, 127
    %v107 = vlaneseq
    %v108 = vshrl.u32 %v107, 7
    %v109 = vadd.s32 %v108, 8
    %vm110 = vcmp.eq.s32.totalorder %v106, %v109
    %v111 = vlaneseq
    %v112 = vand.u32 %v111, 127
    %vm113 = vcmp.eq.s32.totalorder %v112, 15
    %v114 = vsel %vm113, 1.0, -1.0
    %v115 = vsel %vm110, %v114, 0.0
    %s116 = scalar_lea.vmem [#allocation2], 14
    %v117 = vld [vmem:[%s116] ss:$0 sm:$0xff]
    %v118 = vxor.u32 %v117, 2147483648
    %v119 = vlaneseq
    %v120 = vand.u32 %v119, 127
    %vm121 = vcmp.eq.s32.totalorder %v120, 14
    %v122 = vmul.f32 %v118, %v115
    %123 = vadd.xlane.f32.xlu0 %v122
    %v124 = vpop.xlane.xlu0 %123
    %v125 = vsel %vm121, %v124, %v115
    %s126 = scalar_lea.vmem [#allocation2], 13
    %v127 = vld [vmem:[%s126] ss:$0 sm:$0xff]
    %v128 = vxor.u32 %v127, 2147483648
    %v129 = vlaneseq
    %v130 = vand.u32 %v129, 127
    %vm131 = vcmp.eq.s32.totalorder %v130, 13
    %v132 = vmul.f32 %v128, %v125
    %133 = vadd.xlane.f32.xlu0 %v132
    %v134 = vpop.xlane.xlu0 %133
    %v135 = vsel %vm131, %v134, %v125
    %s136 = scalar_lea.vmem [#allocation2], 12
    %v137 = vld [vmem:[%s136] ss:$0 sm:$0xff]
    %v138 = vxor.u32 %v137, 2147483648
    %v139 = vlaneseq
    %v140 = vand.u32 %v139, 127
    %vm141 = vcmp.eq.s32.totalorder %v140, 12
    %v142 = vmul.f32 %v138, %v135
    %143 = vadd.xlane.f32.xlu0 %v142
    %v144 = vpop.xlane.xlu0 %143
    %v145 = vsel %vm141, %v144, %v135
    %s146 = scalar_lea.vmem [#allocation2], 11
    %v147 = vld [vmem:[%s146] ss:$0 sm:$0xff]
    %v148 = vxor.u32 %v147, 2147483648
    %v149 = vlaneseq
    %v150 = vand.u32 %v149, 127
    %vm151 = vcmp.eq.s32.totalorder %v150, 11
    %v152 = vmul.f32 %v148, %v145
    %153 = vadd.xlane.f32.xlu0 %v152
    %v154 = vpop.xlane.xlu0 %153
    %v155 = vsel %vm151, %v154, %v145
    %s156 = scalar_lea.vmem [#allocation2], 10
    %v157 = vld [vmem:[%s156] ss:$0 sm:$0xff]
    %v158 = vxor.u32 %v157, 2147483648
    %v159 = vlaneseq
    %v160 = vand.u32 %v159, 127
    %vm161 = vcmp.eq.s32.totalorder %v160, 10
    %v162 = vmul.f32 %v158, %v155
    %163 = vadd.xlane.f32.xlu0 %v162
    %v164 = vpop.xlane.xlu0 %163
    %v165 = vsel %vm161, %v164, %v155
    %s166 = scalar_lea.vmem [#allocation2], 9
    %v167 = vld [vmem:[%s166] ss:$0 sm:$0xff]
    %v168 = vxor.u32 %v167, 2147483648
    %v169 = vlaneseq
    %v170 = vand.u32 %v169, 127
    %vm171 = vcmp.eq.s32.totalorder %v170, 9
    %v172 = vmul.f32 %v168, %v165
    %173 = vadd.xlane.f32.xlu0 %v172
    %v174 = vpop.xlane.xlu0 %173
    %v175 = vsel %vm171, %v174, %v165
    %s176 = scalar_lea.vmem [#allocation2], 8
    %v177 = vld [vmem:[%s176] ss:$0 sm:$0xff]
    %v178 = vxor.u32 %v177, 2147483648
    %v179 = vlaneseq
    %v180 = vand.u32 %v179, 127
    %vm181 = vcmp.eq.s32.totalorder %v180, 8
    %v182 = vmul.f32 %v178, %v175
    %183 = vadd.xlane.f32.xlu0 %v182
    %v184 = vpop.xlane.xlu0 %183
    %v185 = vsel %vm181, %v184, %v175
    %s186 = scalar_lea.vmem [#allocation2], 7
    %v187 = vld [vmem:[%s186] ss:$0 sm:$0xff]
    %v188 = vxor.u32 %v187, 2147483648
    %v189 = vlaneseq
    %v190 = vand.u32 %v189, 127
    %vm191 = vcmp.eq.s32.totalorder %v190, 7
    %v192 = vmul.f32 %v188, %v104
    %193 = vadd.xlane.f32.xlu0 %v192
    %v194 = vpop.xlane.xlu0 %193
    %v195 = vsel %vm191, %v194, %v104
    %v196 = vmul.f32 %v188, %v185
    %197 = vadd.xlane.f32.xlu0 %v196
    %v198 = vpop.xlane.xlu0 %197
    %v199 = vsel %vm191, %v198, %v185
    %s200 = scalar_lea.vmem [#allocation2], 6
    %v201 = vld [vmem:[%s200] ss:$0 sm:$0xff]
    %v202 = vxor.u32 %v201, 2147483648
    %v203 = vlaneseq
    %v204 = vand.u32 %v203, 127
    %vm205 = vcmp.eq.s32.totalorder %v204, 6
    %v206 = vmul.f32 %v202, %v195
    %207 = vadd.xlane.f32.xlu0 %v206
    %v208 = vpop.xlane.xlu0 %207
    %v209 = vsel %vm205, %v208, %v195
    %v210 = vmul.f32 %v202, %v199
    %211 = vadd.xlane.f32.xlu0 %v210
    %v212 = vpop.xlane.xlu0 %211
    %v213 = vsel %vm205, %v212, %v199
    %s214 = scalar_lea.vmem [#allocation2], 5
    %v215 = vld [vmem:[%s214] ss:$0 sm:$0xff]
    %v216 = vxor.u32 %v215, 2147483648
    %v217 = vlaneseq
    %v218 = vand.u32 %v217, 127
    %vm219 = vcmp.eq.s32.totalorder %v218, 5
    %v220 = vmul.f32 %v216, %v209
    %221 = vadd.xlane.f32.xlu0 %v220
    %v222 = vpop.xlane.xlu0 %221
    %v223 = vsel %vm219, %v222, %v209
    %v224 = vmul.f32 %v216, %v213
    %225 = vadd.xlane.f32.xlu0 %v224
    %v226 = vpop.xlane.xlu0 %225
    %v227 = vsel %vm219, %v226, %v213
    %s228 = scalar_lea.vmem [#allocation2], 4
    %v229 = vld [vmem:[%s228] ss:$0 sm:$0xff]
    %v230 = vxor.u32 %v229, 2147483648
    %v231 = vlaneseq
    %v232 = vand.u32 %v231, 127
    %vm233 = vcmp.eq.s32.totalorder %v232, 4
    %v234 = vmul.f32 %v230, %v223
    %235 = vadd.xlane.f32.xlu0 %v234
    %v236 = vpop.xlane.xlu0 %235
    %v237 = vsel %vm233, %v236, %v223
    %v238 = vmul.f32 %v230, %v227
    %239 = vadd.xlane.f32.xlu0 %v238
    %v240 = vpop.xlane.xlu0 %239
    %v241 = vsel %vm233, %v240, %v227
    %s242 = scalar_lea.vmem [#allocation2], 3
    %v243 = vld [vmem:[%s242] ss:$0 sm:$0xff]
    %v244 = vxor.u32 %v243, 2147483648
    %v245 = vlaneseq
    %v246 = vand.u32 %v245, 127
    %vm247 = vcmp.eq.s32.totalorder %v246, 3
    %v248 = vmul.f32 %v244, %v237
    %249 = vadd.xlane.f32.xlu0 %v248
    %v250 = vpop.xlane.xlu0 %249
    %v251 = vsel %vm247, %v250, %v237
    %v252 = vmul.f32 %v244, %v241
    %253 = vadd.xlane.f32.xlu0 %v252
    %v254 = vpop.xlane.xlu0 %253
    %v255 = vsel %vm247, %v254, %v241
    %s256 = scalar_lea.vmem [#allocation2], 2
    %v257 = vld [vmem:[%s256] ss:$0 sm:$0xff]
    %v258 = vxor.u32 %v257, 2147483648
    %v259 = vlaneseq
    %v260 = vand.u32 %v259, 127
    %vm261 = vcmp.eq.s32.totalorder %v260, 2
    %v262 = vmul.f32 %v258, %v251
    %263 = vadd.xlane.f32.xlu0 %v262
    %v264 = vpop.xlane.xlu0 %263
    %v265 = vsel %vm261, %v264, %v251
    %v266 = vmul.f32 %v258, %v255
    %267 = vadd.xlane.f32.xlu0 %v266
    %v268 = vpop.xlane.xlu0 %267
    %v269 = vsel %vm261, %v268, %v255
    %s270 = scalar_lea.vmem [#allocation2], 1
    %v271 = vld [vmem:[%s270] ss:$0 sm:$0xff]
    %v272 = vxor.u32 %v271, 2147483648
    %v273 = vlaneseq
    %v274 = vand.u32 %v273, 127
    %vm275 = vcmp.eq.s32.totalorder %v274, 1
    %v276 = vmul.f32 %v272, %v265
    %277 = vadd.xlane.f32.xlu0 %v276
    %v278 = vpop.xlane.xlu0 %277
    %v279 = vsel %vm275, %v278, %v265
    %v280 = vmul.f32 %v272, %v269
    %281 = vadd.xlane.f32.xlu0 %v280
    %v282 = vpop.xlane.xlu0 %281
    %v283 = vsel %vm275, %v282, %v269
    %v284 = vld [vmem:[#allocation2] ss:$0 sm:$0xff]
    %v285 = vxor.u32 %v284, 2147483648
    %v286 = vlaneseq
    %v287 = vand.u32 %v286, 127
    %vm288 = vcmp.eq.s32.totalorder %v287, 0
    %v289 = vmul.f32 %v285, %v279
    %290 = vadd.xlane.f32.xlu0 %v289
    %v291 = vpop.xlane.xlu0 %290
    %v292 = vsel %vm288, %v291, %v279
    %v293 = vmul.f32 %v285, %v283
    %294 = vadd.xlane.f32.xlu0 %v293
    %v295 = vpop.xlane.xlu0 %294
    %v296 = vsel %vm288, %v295, %v283
    %v297 = vrcp.pop %v49
    %v298 = vmul.f32 %v49, %v297
    %v299 = vsub.f32 1.0, %v298
    %v300 = vmul.f32 %v297, %v299
    %v301 = vadd.f32 %v297, %v300
    %vm302 = vweird.f32 %v49
    %vm303 = vweird.f32 %v297
    %vm304 = vmor %vm302, %vm303
    %v305 = vsel %vm304, %v297, %v301
    %v306 = vand.u32 2147483647, %v49
    %vm307 = vcmp.eq.f32.partialorder %v306, 8.507059e+37
    %v308 = vand.u32 %v49, 2147483648
    %v309 = vor.u32 1.1754944e-38, %v308
    %v310 = vsel %vm307, %v309, %v305
    %v311 = vmul.f32 %v292, %v310
    %vm312 = vweird.f32 %v49
    %v313 = vsel %vm312, %v292, %v311
    %314 = vst [vmem:[#allocation1] sm:$0xff] %v313
    %v315 = vrcp.pop %v78
    %v316 = vmul.f32 %v78, %v315
    %v317 = vsub.f32 1.0, %v316
    %v318 = vmul.f32 %v315, %v317
    %v319 = vadd.f32 %v315, %v318
    %vm320 = vweird.f32 %v78
    %vm321 = vweird.f32 %v315
    %vm322 = vmor %vm320, %vm321
    %v323 = vsel %vm322, %v315, %v319
    %v324 = vand.u32 2147483647, %v78
    %vm325 = vcmp.eq.f32.partialorder %v324, 8.507059e+37
    %v326 = vand.u32 %v78, 2147483648
    %v327 = vor.u32 1.1754944e-38, %v326
    %v328 = vsel %vm325, %v327, %v323
    %v329 = vmul.f32 %v296, %v328
    %vm330 = vweird.f32 %v78
    %v331 = vsel %vm330, %v296, %v329
    %s332 = scalar_lea.vmem [#allocation1], 8
    %333 = vst [vmem:[%s332] sm:$0xff] %v331
    // Predicated region
    $region36: #{custom-call.9} parent=1 // pred_check
      _
    $region37: #{custom-call.9} parent=1 // pred_check_branch
      %335 = sbr.rel (0) target = $region39
    $region38: #{custom-call.9} parent=1 // pred_region
      // Predicated region
      $region40: #{custom-call.9} parent=38 // pred_check
        _
      $region41: #{custom-call.9} parent=38 // pred_check_branch
        %337 = sbr.rel (0) target = $region43
      $region42: #{custom-call.9} parent=38 // pred_region
        // Predicated region
        $region55: #{custom-call.9} parent=42 // pred_check
          _
        $region56: #{custom-call.9} parent=42 // pred_check_branch
          %355 = sbr.rel (0) target = $region58
        $region57: #{custom-call.9} parent=42 // pred_region
          loop: start=0, step=1, limit=1
          $region59: #{custom-call.9} parent=57 // loop_pre_header
            _
          $region60: #{custom-call.9} parent=57 // loop_header
            %s357 = sphi 0, %s361
            %p358 = scmp.ge.s32.totalorder %s357, 1
            %s362 = sphi [#allocation1], [#allocation1]
            %s363 = sphi %s1, %s1
          $region61: #{custom-call.9} parent=57 // loop_header_branch
            %360 = sbr.rel (%p358) target = $region65
          $region62: #{custom-call.9} parent=57 // loop_body
            %v364 = vld [vmem:[%s362] sm:$0xff]
            %365 = vst [vmem:[%s363] sm:$0xff] %v364
            %v366 = vld [vmem:[%s362 + $0x8] sm:$0xff]
            %367 = vst [vmem:[%s363 + $0x8] sm:$0xff] %v366
          $region63: #{custom-call.9} parent=57 // loop_footer
            %s361 = sadd.s32 1, %s357
          $region64: #{custom-call.9} parent=57 // loop_footer_branch
            %356 = sbr.rel target = $region60
          $region65: #{custom-call.9} parent=57 // loop_exit
            _
        $region58: #{custom-call.9} parent=42 // pred_fallthru
          _
        // Predicated region
        $region66: #{custom-call.9} parent=42 // pred_check
          _
        $region67: #{custom-call.9} parent=42 // pred_check_branch
          %369 = sbr.rel target = $region69
        $region68: #{custom-call.9} parent=42 // pred_region
          _
        $region69: #{custom-call.9} parent=42 // pred_fallthru
          _
      $region43: #{custom-call.9} parent=38 // pred_fallthru
        _
      // Predicated region
      $region44: #{custom-call.9} parent=38 // pred_check
        _
      $region45: #{custom-call.9} parent=38 // pred_check_branch
        %339 = sbr.rel target = $region47
      $region46: #{custom-call.9} parent=38 // pred_region
        %s341 = ssub.s32 256, 1
        loop: start=0, step=1, limit=1
        $region48: #{custom-call.9} parent=46 // loop_pre_header
          _
        $region49: #{custom-call.9} parent=46 // loop_header
          %s343 = sphi 0, %s347
          %p344 = scmp.ge.s32.totalorder %s343, 1
          %s348 = sphi [#allocation1], [#allocation1]
          %s349 = sphi %s1, %s1
        $region50: #{custom-call.9} parent=46 // loop_header_branch
          %346 = sbr.rel (%p344) target = $region54
        $region51: #{custom-call.9} parent=46 // loop_body
          %v350 = vld [vmem:[%s348] sm:%s341]
          %351 = vst [vmem:[%s349] sm:%s341] %v350
          %v352 = vld [vmem:[%s348 + $0x8] sm:%s341]
          %353 = vst [vmem:[%s349 + $0x8] sm:%s341] %v352
        $region52: #{custom-call.9} parent=46 // loop_footer
          %s347 = sadd.s32 1, %s343
        $region53: #{custom-call.9} parent=46 // loop_footer_branch
          %342 = sbr.rel target = $region49
        $region54: #{custom-call.9} parent=46 // loop_exit
          _
      $region47: #{custom-call.9} parent=38 // pred_fallthru
        _
    $region39: #{custom-call.9} parent=1 // pred_fallthru
      _
    %370 = vnop

// kernel: _forward_impl.1
$region0: #{_forward_impl.1}
  #allocation0 [shape = 'u32[]', space=smem, size = 0x4, offset = 0x4, fixed_abs, tag = 'smem constant byte address 0x4 - core index']
  #allocation1 [shape = 'u32[72,128]{1,0:T(1,128)}', space=vmem, size = 0x9000, scoped, tag = 'internal scratch']
  #allocation2 [shape = 's32[1]{0}', space=sflag, size = 0x4, scoped, tag = 'scoped memory for _forward_impl.1']
  #allocation3 [shape = 's32[1]{0:T(128)S(6)}', space=smem, size = 0x200, scoped, tag = 'prefetched SMEM operand 0']
  %s0 = inlined_call_operand.<no memory space> [shape: s32[1], index: 0, kind: input, shape index: {}]
  %s1 = inlined_call_operand.vmem [shape: f32[16,16], index: 1, kind: input, shape index: {}]
  %s2 = inlined_call_operand.vmem [shape: f32[16,16], index: 2, kind: output, shape index: {0}]
  %s3 = inlined_call_operand.vmem [shape: f32[16,1], index: 3, kind: output, shape index: {1}]
  %4 = xla_tuple %s2, %s3
  %s5 = sld [smem:[#allocation0]]
  $region22: #{_forward_impl.1} parent=0
    _
  %s7 = ssub.s32 1, %s5
  %s8 = scalar_select 0, %s7, %s5
  %9 = sst [smem:[#allocation3]] %s0
  // Predicated region
  $region2: #{_forward_impl.1} parent=0 // pred_check
    _
  $region3: #{_forward_impl.1} parent=0 // pred_check_branch
    %11 = sbr.rel (0) target = $region5
  $region4: #{_forward_impl.1} parent=0 // pred_region
    _
  $region5: #{_forward_impl.1} parent=0 // pred_fallthru
    _
  %s12 = sld [smem:[#allocation3]]
  %v13 = vld [vmem:[%s1] sm:$0xff]
  %v14 = vld [vmem:[%s1 + $0x8] sm:$0xff]
  %v15 = vlaneseq
  %v16 = vshrl.u32 %v15, 7
  %v17 = vadd.s32 %v16, 8
  %s18 = smul.u32 0, 16
  %v19 = vstv %s18
  %v20 = vadd.s32 %v16, %v19
  %v21 = vadd.s32 %v17, %v19
  %v22 = vlaneseq
  %v23 = vand.u32 %v22, 127
  %vm24 = vcmp.eq.s32.totalorder %v20, %v23
  %vm25 = vcmp.eq.s32.totalorder %v21, %v23
  %vm26 = vcmask 130048
  %v27 = vsel %vm26, %v13, 0.0
  %28 = vadd.xlane.f32.xlu0 %v27
  %v29 = vpop.xlane.xlu0 %28
  %v30 = vsel %vm26, %v14, 0.0
  %31 = vadd.xlane.f32.xlu0 %v30
  %v32 = vpop.xlane.xlu0 %31
  %v33 = vsub.f32 0.0, %v13
  %v34 = vsub.f32 0.0, %v14
  %v35 = vsel %vm24, %v29, %v33
  %v36 = vsel %vm25, %v32, %v34
  %v37 = vstv %s12
  %vm38 = vcmp.eq.s32.totalorder %v20, %v37
  %vm39 = vcmp.eq.s32.totalorder %v21, %v37
  %vm40 = vcmp.eq.s32.totalorder %v23, %v37
  %vm41 = vmor %vm38, %vm40
  %vm42 = vmor %vm39, %vm40
  %v43 = vsel %vm24, 1.0, 0.0
  %v44 = vsel %vm25, 1.0, 0.0
  %v45 = vsel %vm41, %v43, %v35
  %v46 = vsel %vm42, %v44, %v36
  %47 = vst.msk [vmem:[%s2] sm:$0xff] %vm26, %v45
  %48 = vst.msk [vmem:[%s2 + $0x8] sm:$0xff] %vm26, %v46
  %v49 = vsel %vm38, 0.0, %v29
  %v50 = vsel %vm39, 0.0, %v32
  %vm51 = vcmask 7168
  %52 = vst.msk [vmem:[%s3] sm:$0xff] %vm51, %v49
  %53 = vst.msk [vmem:[%s3 + $0x8] sm:$0xff] %vm51, %v50
  // Predicated region
  $region6: #{_forward_impl.1} parent=0 // pred_check
    _
  $region7: #{_forward_impl.1} parent=0 // pred_check_branch
    %55 = sbr.rel (0) target = $region9
  $region8: #{_forward_impl.1} parent=0 // pred_region
    _
  $region9: #{_forward_impl.1} parent=0 // pred_fallthru
    _
  // Predicated region
  $region10: #{_forward_impl.1} parent=0 // pred_check
    _
  $region11: #{_forward_impl.1} parent=0 // pred_check_branch
    %57 = sbr.rel (0) target = $region13
  $region12: #{_forward_impl.1} parent=0 // pred_region
    _
  $region13: #{_forward_impl.1} parent=0 // pred_fallthru
    _
  // Predicated region
  $region14: #{_forward_impl.1} parent=0 // pred_check
    _
  $region15: #{_forward_impl.1} parent=0 // pred_check_branch
    %59 = sbr.rel (0) target = $region17
  $region16: #{_forward_impl.1} parent=0 // pred_region
    _
  $region17: #{_forward_impl.1} parent=0 // pred_fallthru
    _
  // Predicated region
  $region18: #{_forward_impl.1} parent=0 // pred_check
    _
  $region19: #{_forward_impl.1} parent=0 // pred_check_branch
    %61 = sbr.rel (0) target = $region21
  $region20: #{_forward_impl.1} parent=0 // pred_region
    _
  $region21: #{_forward_impl.1} parent=0 // pred_fallthru
    _

</llo_original>
